<compile_context>
chip_gen: v7x
topology: tpu7x:2x2x1
jax: 0.10.0
libtpu: 0.0.40
codegen_flags: <defaults>
</compile_context>

<pallas_src>
import functools
import math

import jax
import jax.numpy as jnp
from jax.experimental import pallas as pl
from jax.experimental.pallas import tpu as pltpu


_SQRT_2_OVER_PI = math.sqrt(2.0 / math.pi)


def _gelu_fi_kernel(x_ref, o_ref):
    # x_ref / o_ref: (TR, C) lane-dense tile in VMEM. Pure VPU/EUP elementwise work.
    x = x_ref[...]
    if x.dtype != jnp.float32:
        # Narrow inputs (e.g. bf16) are upcast for tanh accuracy; fp32 inputs pass
        # through untouched (no extra vreg pressure on the common fp32 path).
        x = x.astype(jnp.float32)

    b = 0.044715 * (x * x * x)
    # TODO(synk): operation_fi(b, ber, bit) -> identity
    c = x + b
    # TODO(synk): operation_fi(c, ber, bit) -> identity
    d = _SQRT_2_OVER_PI * c
    # TODO(synk): operation_fi(d, ber, bit) -> identity
    e = 1.0 + jnp.tanh(d)          # EUP transcendental (separate issue slot)
    # TODO(synk): operation_fi(e, ber, bit) -> identity
    f = 0.5 * x
    # TODO(synk): operation_fi(f, ber, bit) -> identity
    y = f * e
    # TODO(synk): operation_fi(y, ber, bit) -> identity
    o_ref[...] = y.astype(o_ref.dtype)


def _round_up(n, m):
    return ((n + m - 1) // m) * m


@functools.partial(jax.jit, static_argnames=("lane_width", "block_bytes"))
def _gelu_fi_flat(x, *, lane_width=512, block_bytes=4 << 20):
    """Elementwise GELU_fi over a flattened, lane-dense 2-D view of x."""
    orig_shape = x.shape
    orig_dtype = x.dtype
    n = x.size
    itemsize = jnp.dtype(orig_dtype).itemsize

    C = lane_width                                   # multiple of 128 -> unmasked stores
    rows = max(1, pl.cdiv(n, C))
    rows = _round_up(rows, 8)                        # sublane alignment

    # Row tile from a per-buffer VMEM budget (in + out, double-buffered ~= 4x this).
    tr_target = max(8, (block_bytes // (C * itemsize)) // 8 * 8)
    TR = min(tr_target, rows)
    rows_p = _round_up(rows, TR)

    xf = x.reshape(-1)
    pad = rows_p * C - n
    if pad:
        xf = jnp.pad(xf, (0, pad))                   # GELU(0) == 0, padding is harmless
    x2 = xf.reshape(rows_p, C)

    out = pl.pallas_call(
        _gelu_fi_kernel,
        out_shape=jax.ShapeDtypeStruct((rows_p, C), orig_dtype),
        grid_spec=pltpu.PrefetchScalarGridSpec(
            num_scalar_prefetch=0,
            grid=(rows_p // TR,),
            in_specs=[pl.BlockSpec((TR, C), lambda i: (i, 0))],
            out_specs=pl.BlockSpec((TR, C), lambda i: (i, 0)),
        ),
        compiler_params=pltpu.CompilerParams(
            dimension_semantics=("parallel",),        # shard rows across TCs (v7x)
            vmem_limit_bytes=48 << 20,                # > default scoped, < v7x 64 MiB
        ),
    )(x2)

    return out.reshape(-1)[:n].reshape(orig_shape)


def gelu_fi_pallas(x, ber=0.0, bit=8):
    """Pallas implementation of gelu_fi (operation_fi == identity)."""
    del ber, bit  # TODO(synk): fault injection treated as identity (see kernel hooks)
    return _gelu_fi_flat(x)


class GELUFi:
    """JAX/Pallas counterpart of the PyTorch GELU_fi module."""

    def __init__(self, ber, bit):
        self.ber = ber
        self.bit = bit

    def __call__(self, x):
        return gelu_fi_pallas(x, ber=self.ber, bit=self.bit)


if __name__ == "__main__":
    key = jax.random.PRNGKey(0)
    # Small NCHW-style activation tensor.
    x = jax.random.normal(key, (2, 4, 16, 16), dtype=jnp.float32)

    mod = GELUFi(ber=0.0, bit=8)
    y = mod(x)
    y = jax.block_until_ready(y)

    # Pure-JAX reference of the exact same math (tanh-approx GELU).
    a = math.sqrt(2.0 / math.pi)
    ref = (0.5 * x) * (1.0 + jnp.tanh(a * (x + 0.044715 * (x ** 3))))

    assert y.shape == x.shape and y.dtype == x.dtype
    assert jnp.allclose(y, ref, atol=1e-5, rtol=1e-5)

    print("KERNEL_OK")
</pallas_src>

<mosaic_0001>
module attributes {stable_mosaic.version = 11 : i64} {
  func.func @_gelu_fi_kernel(%arg0: i32, %arg1: memref<8x512xf32, #tpu.memory_space<vmem>>, %arg2: memref<8x512xf32, #tpu.memory_space<vmem>>) attributes {dimension_semantics = [#tpu.dimension_semantics<parallel>], iteration_bounds = array<i64: 1>, scalar_prefetch = 0 : i64, scratch_operands = 0 : i64, tpu.core_type = #tpu.core_type<tc>, window_params = [{transform_indices = @transform_0, window_bounds = array<i64: 8, 512>}, {transform_indices = @transform_1, window_bounds = array<i64: 8, 512>}]} {
    %c0 = arith.constant 0 : index
    %c0_0 = arith.constant 0 : index
    %0 = vector.load %arg1[%c0, %c0_0] : memref<8x512xf32, #tpu.memory_space<vmem>>, vector<8x512xf32>
    %1 = arith.mulf %0, %0 : vector<8x512xf32>
    %2 = arith.mulf %1, %0 : vector<8x512xf32>
    %cst = arith.constant 4.471500e-02 : f32
    %3 = vector.broadcast %cst : f32 to vector<8x512xf32>
    %4 = arith.mulf %3, %2 : vector<8x512xf32>
    %5 = arith.addf %0, %4 : vector<8x512xf32>
    %cst_1 = arith.constant 0.797884583 : f32
    %6 = vector.broadcast %cst_1 : f32 to vector<8x512xf32>
    %7 = arith.mulf %6, %5 : vector<8x512xf32>
    %8 = math.tanh %7 : vector<8x512xf32>
    %cst_2 = arith.constant 1.000000e+00 : f32
    %9 = vector.broadcast %cst_2 : f32 to vector<8x512xf32>
    %10 = arith.addf %9, %8 : vector<8x512xf32>
    %cst_3 = arith.constant 5.000000e-01 : f32
    %11 = vector.broadcast %cst_3 : f32 to vector<8x512xf32>
    %12 = arith.mulf %11, %0 : vector<8x512xf32>
    %13 = arith.mulf %12, %10 : vector<8x512xf32>
    %c0_4 = arith.constant 0 : index
    %c0_5 = arith.constant 0 : index
    %14 = vector.load %arg2[%c0_4, %c0_5] : memref<8x512xf32, #tpu.memory_space<vmem>>, vector<8x512xf32>
    tpu.vector_store %arg2[%c0_4, %c0_5], %13 {strides = array<i32>} : memref<8x512xf32, #tpu.memory_space<vmem>>, vector<8x512xf32>,
    return
  }
  func.func @transform_0(%arg0: i32) -> (i32, i32) {
    %c0_i32 = arith.constant 0 : i32
    %c0_i32_0 = arith.constant 0 : i32
    return %arg0, %c0_i32 : i32, i32
  }
  func.func @transform_1(%arg0: i32) -> (i32, i32) {
    %c0_i32 = arith.constant 0 : i32
    %c0_i32_0 = arith.constant 0 : i32
    return %arg0, %c0_i32 : i32, i32
  }
}

</mosaic_0001>

<llo_original>
// kernel: _gelu_fi_flat.1
$region0: #{_gelu_fi_flat.1}
  #allocation0 [shape = 'u32[]', space=smem, size = 0x4, offset = 0x4, fixed_abs, tag = 'smem constant byte address 0x4 - core index']
  #allocation1 [shape = 'u32[144,128]{1,0:T(1,128)}', space=vmem, size = 0x12000, scoped, tag = 'internal scratch']
  %s0 = inlined_call_operand.vmem [shape: f32[8,512], index: 0, kind: input, shape index: {}]
  %s1 = inlined_call_operand.vmem [shape: f32[8,512], index: 1, kind: output, shape index: {}]
  %s2 = sld [smem:[#allocation0]]
  $region14: #{_gelu_fi_flat.1} parent=0
    _
  %s4 = ssub.s32 1, %s2
  %s5 = scalar_select 0, %s4, %s2
  // Predicated region
  $region2: #{_gelu_fi_flat.1} parent=0 // pred_check
    _
  $region3: #{_gelu_fi_flat.1} parent=0 // pred_check_branch
    %7 = sbr.rel (0) target = $region5
  $region4: #{_gelu_fi_flat.1} parent=0 // pred_region
    _
  $region5: #{_gelu_fi_flat.1} parent=0 // pred_fallthru
    _
  %v8 = vld [vmem:[%s0] sm:$0xff]
  %v9 = vld [vmem:[%s0 + $0x8] sm:$0xff]
  %v10 = vld [vmem:[%s0 + $0x10] sm:$0xff]
  %v11 = vld [vmem:[%s0 + $0x18] sm:$0xff]
  %v12 = vmul.f32 %v8, %v8
  %v13 = vmul.f32 %v9, %v9
  %v14 = vmul.f32 %v10, %v10
  %v15 = vmul.f32 %v11, %v11
  %v16 = vmul.f32 %v12, %v8
  %v17 = vmul.f32 %v13, %v9
  %v18 = vmul.f32 %v14, %v10
  %v19 = vmul.f32 %v15, %v11
  %v20 = vmul.f32 %v16, 0.044715
  %v21 = vmul.f32 %v17, 0.044715
  %v22 = vmul.f32 %v18, 0.044715
  %v23 = vmul.f32 %v19, 0.044715
  %v24 = vadd.f32 %v8, %v20
  %v25 = vadd.f32 %v9, %v21
  %v26 = vadd.f32 %v10, %v22
  %v27 = vadd.f32 %v11, %v23
  %v28 = vmul.f32 %v24, 0.7978846
  %v29 = vmul.f32 %v25, 0.7978846
  %v30 = vmul.f32 %v26, 0.7978846
  %v31 = vmul.f32 %v27, 0.7978846
  %v32 = vtanh.pop %v28
  %v33 = vtanh.pop %v29
  %v34 = vtanh.pop %v30
  %v35 = vtanh.pop %v31
  %v36 = vadd.f32 %v32, 1.0
  %v37 = vadd.f32 %v33, 1.0
  %v38 = vadd.f32 %v34, 1.0
  %v39 = vadd.f32 %v35, 1.0
  %v40 = vmul.f32 %v8, 0.5
  %v41 = vmul.f32 %v9, 0.5
  %v42 = vmul.f32 %v10, 0.5
  %v43 = vmul.f32 %v11, 0.5
  %v44 = vmul.f32 %v40, %v36
  %v45 = vmul.f32 %v41, %v37
  %v46 = vmul.f32 %v42, %v38
  %v47 = vmul.f32 %v43, %v39
  %48 = vst [vmem:[%s1] sm:$0xff] %v44
  %49 = vst [vmem:[%s1 + $0x8] sm:$0xff] %v45
  %50 = vst [vmem:[%s1 + $0x10] sm:$0xff] %v46
  %51 = vst [vmem:[%s1 + $0x18] sm:$0xff] %v47
  // Predicated region
  $region6: #{_gelu_fi_flat.1} parent=0 // pred_check
    _
  $region7: #{_gelu_fi_flat.1} parent=0 // pred_check_branch
    %53 = sbr.rel (0) target = $region9
  $region8: #{_gelu_fi_flat.1} parent=0 // pred_region
    _
  $region9: #{_gelu_fi_flat.1} parent=0 // pred_fallthru
    _
  // Predicated region
  $region10: #{_gelu_fi_flat.1} parent=0 // pred_check
    _
  $region11: #{_gelu_fi_flat.1} parent=0 // pred_check_branch
    %55 = sbr.rel (0) target = $region13
  $region12: #{_gelu_fi_flat.1} parent=0 // pred_region
    _
  $region13: #{_gelu_fi_flat.1} parent=0 // pred_fallthru
    _

</llo_original>
